<compile_context>
chip_gen: v7x
topology: tpu7x:2x2x1
jax: 0.10.0
libtpu: 0.0.40
codegen_flags: <defaults>
</compile_context>

<pallas_src>
import jax
import jax.numpy as jnp
from jax.experimental import pallas as pl
from jax.experimental.pallas import tpu as pltpu

_LANES = 128
_DEFAULT_TILE_ROWS = 1024  # 1024 * 128 = 131072 vertices per grid step


def _camera_kernel(params_ref, verts_ref, out_ref):
    # params_ref: SMEM (4,)            fx, fy, cx, cy
    # verts_ref : VMEM (3, TR, 128)    channel-major x / y / z slabs
    # out_ref   : VMEM (2, TR, 128)    channel-major u / v slabs
    x = verts_ref[0]
    y = verts_ref[1]
    z = verts_ref[2]

    inv_z = 1.0 / z  # one exact reciprocal, shared by u and v

    fx = params_ref[0]
    fy = params_ref[1]
    cx = params_ref[2]
    cy = params_ref[3]

    # Distortion is identically (0, 0) in the reference module, so it is a no-op.
    out_ref[0] = fx * (x * inv_z) + cx
    out_ref[1] = fy * (y * inv_z) + cy


def _round_up(a: int, b: int) -> int:
    return ((a + b - 1) // b) * b


def camera_project_cm(verts_cm: jnp.ndarray,
                      params: jnp.ndarray,
                      tile_rows: int = _DEFAULT_TILE_ROWS) -> jnp.ndarray:
    """Channel-major core: verts_cm (3, N) float32 -> (2, N) float32.

    Prefer this entry point when data is already stored channel-major upstream;
    it avoids any extra HBM transpose passes.
    """
    assert verts_cm.ndim == 2 and verts_cm.shape[0] == 3
    N = verts_cm.shape[1]

    rows = pl.cdiv(N, _LANES)                       # 128-lane rows needed
    tr = min(tile_rows, _round_up(max(rows, 1), 8)) # adaptive tile, multiple of 8
    rows_pad = _round_up(rows, tr)
    n_pad = rows_pad * _LANES

    vt = verts_cm.astype(jnp.float32)
    if n_pad != N:
        # pad with 1.0 so padded lanes never divide by zero (results discarded)
        vt = jnp.pad(vt, ((0, 0), (0, n_pad - N)), constant_values=1.0)
    vt = vt.reshape(3, rows_pad, _LANES)            # sublane-dense layout

    out = pl.pallas_call(
        _camera_kernel,
        out_shape=jax.ShapeDtypeStruct((2, rows_pad, _LANES), jnp.float32),
        grid=(rows_pad // tr,),
        in_specs=[
            pl.BlockSpec(memory_space=pltpu.MemorySpace.SMEM),      # intrinsics (4,)
            pl.BlockSpec((3, tr, _LANES), lambda i: (0, i, 0)),     # verts slab
        ],
        out_specs=pl.BlockSpec((2, tr, _LANES), lambda i: (0, i, 0)),
        compiler_params=pltpu.CompilerParams(
            dimension_semantics=("parallel",)),
    )(params.astype(jnp.float32), vt)

    return out.reshape(2, n_pad)[:, :N]


def camera_project(verts: jnp.ndarray,
                   params: jnp.ndarray,
                   tile_rows: int = _DEFAULT_TILE_ROWS) -> jnp.ndarray:
    """Project (N, 3) camera-space vertices to (N, 2) image coordinates.

    Matches CameraModel.forward. The (N,3)<->(3,N) transposes exist only for
    API parity with the PyTorch module.
    # TODO(synk): keep vertices channel-major upstream and call
    # camera_project_cm directly to avoid the extra HBM transpose passes.
    """
    assert verts.ndim == 2 and verts.shape[1] == 3
    out_cm = camera_project_cm(jnp.transpose(verts), params, tile_rows)
    return jnp.transpose(out_cm)                    # (N, 2)


if __name__ == "__main__":
    key = jax.random.PRNGKey(0)
    k1, k2 = jax.random.split(key)

    N = 200  # not a multiple of 128 -> exercises padding; small -> single grid step
    xy = jax.random.normal(k1, (N, 2), dtype=jnp.float32)
    z = jax.random.uniform(k2, (N, 1), dtype=jnp.float32, minval=0.5, maxval=3.0)
    verts = jnp.concatenate([xy, z], axis=1)        # (N, 3)

    # Camera intrinsics (fx, fy, cx, cy), matching the module's params init.
    params = jnp.array([500.0, 480.0, 320.0, 240.0], dtype=jnp.float32)

    out = camera_project(verts, params)
    out = jax.block_until_ready(out)

    # Pure-JAX reference check.
    u_ref = params[0] * (verts[:, 0:1] / verts[:, 2:3]) + params[2]
    v_ref = params[1] * (verts[:, 1:2] / verts[:, 2:3]) + params[3]
    ref = jnp.concatenate([u_ref, v_ref], axis=1)
    assert out.shape == (N, 2)
    assert jnp.allclose(out, ref, rtol=1e-5, atol=1e-5)

    print("KERNEL_OK")
</pallas_src>

<mosaic_0001>
module attributes {stable_mosaic.version = 11 : i64} {
  func.func @_camera_kernel(%arg0: i32, %arg1: memref<4xf32, #tpu.memory_space<smem>>, %arg2: memref<3x8x128xf32, #tpu.memory_space<vmem>>, %arg3: memref<2x8x128xf32, #tpu.memory_space<vmem>>) attributes {dimension_semantics = [#tpu.dimension_semantics<parallel>], iteration_bounds = array<i64: 1>, scalar_prefetch = 0 : i64, scratch_operands = 0 : i64, tpu.core_type = #tpu.core_type<tc>, window_params = [{transform_indices = @transform_0, window_bounds = array<i64: 4>}, {transform_indices = @transform_1, window_bounds = array<i64: 3, 8, 128>}, {transform_indices = @transform_2, window_bounds = array<i64: 2, 8, 128>}]} {
    %c0 = arith.constant 0 : index
    %c0_0 = arith.constant 0 : index
    %c0_1 = arith.constant 0 : index
    %0 = vector.load %arg2[%c0, %c0_0, %c0_1] : memref<3x8x128xf32, #tpu.memory_space<vmem>>, vector<1x8x128xf32>
    %1 = vector.shape_cast %0 : vector<1x8x128xf32> to vector<8x128xf32>
    %c1 = arith.constant 1 : index
    %c0_2 = arith.constant 0 : index
    %c0_3 = arith.constant 0 : index
    %2 = vector.load %arg2[%c1, %c0_2, %c0_3] : memref<3x8x128xf32, #tpu.memory_space<vmem>>, vector<1x8x128xf32>
    %3 = vector.shape_cast %2 : vector<1x8x128xf32> to vector<8x128xf32>
    %c2 = arith.constant 2 : index
    %c0_4 = arith.constant 0 : index
    %c0_5 = arith.constant 0 : index
    %4 = vector.load %arg2[%c2, %c0_4, %c0_5] : memref<3x8x128xf32, #tpu.memory_space<vmem>>, vector<1x8x128xf32>
    %5 = vector.shape_cast %4 : vector<1x8x128xf32> to vector<8x128xf32>
    %cst = arith.constant 1.000000e+00 : f32
    %6 = vector.broadcast %cst : f32 to vector<8x128xf32>
    %7 = arith.divf %6, %5 : vector<8x128xf32>
    %c0_6 = arith.constant 0 : index
    %8 = memref.load %arg1[%c0_6] : memref<4xf32, #tpu.memory_space<smem>>
    %c1_7 = arith.constant 1 : index
    %9 = memref.load %arg1[%c1_7] : memref<4xf32, #tpu.memory_space<smem>>
    %c2_8 = arith.constant 2 : index
    %10 = memref.load %arg1[%c2_8] : memref<4xf32, #tpu.memory_space<smem>>
    %c3 = arith.constant 3 : index
    %11 = memref.load %arg1[%c3] : memref<4xf32, #tpu.memory_space<smem>>
    %12 = arith.mulf %1, %7 : vector<8x128xf32>
    %13 = vector.broadcast %8 : f32 to vector<8x128xf32>
    %14 = arith.mulf %13, %12 : vector<8x128xf32>
    %15 = vector.broadcast %10 : f32 to vector<8x128xf32>
    %16 = arith.addf %14, %15 : vector<8x128xf32>
    %c0_9 = arith.constant 0 : index
    %c0_10 = arith.constant 0 : index
    %c0_11 = arith.constant 0 : index
    %17 = vector.load %arg3[%c0_9, %c0_10, %c0_11] : memref<2x8x128xf32, #tpu.memory_space<vmem>>, vector<1x8x128xf32>
    %18 = vector.shape_cast %17 : vector<1x8x128xf32> to vector<8x128xf32>
    %19 = vector.shape_cast %16 : vector<8x128xf32> to vector<1x8x128xf32>
    tpu.vector_store %arg3[%c0_9, %c0_10, %c0_11], %19 {strides = array<i32>} : memref<2x8x128xf32, #tpu.memory_space<vmem>>, vector<1x8x128xf32>,
    %20 = arith.mulf %3, %7 : vector<8x128xf32>
    %21 = vector.broadcast %9 : f32 to vector<8x128xf32>
    %22 = arith.mulf %21, %20 : vector<8x128xf32>
    %23 = vector.broadcast %11 : f32 to vector<8x128xf32>
    %24 = arith.addf %22, %23 : vector<8x128xf32>
    %c1_12 = arith.constant 1 : index
    %c0_13 = arith.constant 0 : index
    %c0_14 = arith.constant 0 : index
    %25 = vector.load %arg3[%c1_12, %c0_13, %c0_14] : memref<2x8x128xf32, #tpu.memory_space<vmem>>, vector<1x8x128xf32>
    %26 = vector.shape_cast %25 : vector<1x8x128xf32> to vector<8x128xf32>
    %27 = vector.shape_cast %24 : vector<8x128xf32> to vector<1x8x128xf32>
    tpu.vector_store %arg3[%c1_12, %c0_13, %c0_14], %27 {strides = array<i32>} : memref<2x8x128xf32, #tpu.memory_space<vmem>>, vector<1x8x128xf32>,
    return
  }
  func.func @transform_0(%arg0: i32) -> i32 {
    %c0_i32 = arith.constant 0 : i32
    %c0_i32_0 = arith.constant 0 : i32
    return %c0_i32 : i32
  }
  func.func @transform_1(%arg0: i32) -> (i32, i32, i32) {
    %c0_i32 = arith.constant 0 : i32
    %c0_i32_0 = arith.constant 0 : i32
    %c0_i32_1 = arith.constant 0 : i32
    return %c0_i32, %arg0, %c0_i32_0 : i32, i32, i32
  }
  func.func @transform_2(%arg0: i32) -> (i32, i32, i32) {
    %c0_i32 = arith.constant 0 : i32
    %c0_i32_0 = arith.constant 0 : i32
    %c0_i32_1 = arith.constant 0 : i32
    return %c0_i32, %arg0, %c0_i32_0 : i32, i32, i32
  }
}

</mosaic_0001>

<llo_original>
// kernel: tpu_custom_call.1
$region0: #{tpu_custom_call.1}
  #allocation0 [shape = 'u32[]', space=smem, size = 0x4, offset = 0x4, fixed_abs, tag = 'smem constant byte address 0x4 - core index']
  #allocation1 [shape = 'u32[144,128]{1,0:T(1,128)}', space=vmem, size = 0x12000, scoped, tag = 'internal scratch']
  %s0 = inlined_call_operand.hbm [shape: f32[4], index: 0, kind: input, shape index: {}]
  %s1 = inlined_call_operand.hbm [shape: f32[3,8,128], index: 1, kind: input, shape index: {}]
  %s2 = inlined_call_operand.hbm [shape: f32[2,8,128], index: 2, kind: output, shape index: {}]
  %s3 = sld [smem:[#allocation0]]
  $region26: #{tpu_custom_call.1} parent=0
    _
  %s5 = ssub.s32 1, %s3
  %s6 = scalar_select 0, %s5, %s3
  $region1: #{tpu_custom_call.1} parent=0
    #allocation2 [shape = 'u8[512]{0}', space=smem, size = 0x200, scoped, tag = 'input window, operand 0, single buffered']
    #allocation3 [shape = 's32[1]{0}', space=sflag, size = 0x4, scoped, tag = 'scoped memory for tpu_custom_call.1']
    #allocation4 [shape = 's32[1]{0}', space=sflag, size = 0x4, scoped, tag = 'scoped memory for tpu_custom_call.1']
    #allocation5 [shape = 's32[1]{0}', space=sflag, size = 0x4, scoped, tag = 'scoped memory for tpu_custom_call.1']
    #allocation6 [shape = 'u8[12288]{0}', space=vmem, size = 0x3000, scoped, tag = 'input window, operand 1, single buffered']
    #allocation7 [shape = 'u8[8192]{0}', space=vmem, size = 0x2000, scoped, tag = 'output window, operand 0, single buffered']
    %7 = vsyncpa [#allocation5], 0
    %8 = vsyncpa [#allocation3], 0
    %9 = vsyncpa [#allocation4], 0
    // Predicated region
    $region2: #{tpu_custom_call.1} parent=1 // pred_check
      _
    $region3: #{tpu_custom_call.1} parent=1 // pred_check_branch
      %11 = sbr.rel (0) target = $region5
    $region4: #{tpu_custom_call.1} parent=1 // pred_region
      %s13 = ssub.s32 16, 16
      %14 = vsyncadd [#allocation5], %s13
      %17 = dma.hbm_to_smem %s0, 16, [#allocation2], [#allocation5]
    $region5: #{tpu_custom_call.1} parent=1 // pred_fallthru
      _
    // Predicated region
    $region6: #{tpu_custom_call.1} parent=1 // pred_check
      _
    $region7: #{tpu_custom_call.1} parent=1 // pred_check_branch
      %19 = sbr.rel (0) target = $region9
    $region8: #{tpu_custom_call.1} parent=1 // pred_region
      %s21 = ssub.s32 384, 384
      %22 = vsyncadd [#allocation3], %s21
      %s23 = sshll.u32 [#allocation6], 4
      %s24 = int_to_ptr.vmem [resolvable:$true] %s23
      %29 = dma.hbm_to_vmem [thread:$0]  %s1, 384, %s24, [#allocation3], 128, 128, 8
    $region9: #{tpu_custom_call.1} parent=1 // pred_fallthru
      _
    // Predicated region
    $region10: #{tpu_custom_call.1} parent=1 // pred_check
      _
    $region11: #{tpu_custom_call.1} parent=1 // pred_check_branch
      %31 = sbr.rel (0) target = $region13
    $region12: #{tpu_custom_call.1} parent=1 // pred_region
      %32 = dma.done [#allocation5], 16
    $region13: #{tpu_custom_call.1} parent=1 // pred_fallthru
      _
    // Predicated region
    $region14: #{tpu_custom_call.1} parent=1 // pred_check
      _
    $region15: #{tpu_custom_call.1} parent=1 // pred_check_branch
      %34 = sbr.rel (0) target = $region17
    $region16: #{tpu_custom_call.1} parent=1 // pred_region
      %35 = dma.done [#allocation3], 384
    $region17: #{tpu_custom_call.1} parent=1 // pred_fallthru
      _
    %36 = sfence
    %v37 = vld [vmem:[#allocation6] sm:$0xff]
    %s38 = scalar_lea.vmem [#allocation6], 8
    %v39 = vld [vmem:[%s38] sm:$0xff]
    %s40 = scalar_lea.vmem [#allocation6], 16
    %v41 = vld [vmem:[%s40] sm:$0xff]
    %v42 = vrcp.pop %v41
    %v43 = vmul.f32 1.0, %v42
    %s44 = sld [smem:[#allocation2]]
    %s45 = sld [smem:[#allocation2 + $0x1]]
    %s46 = sld [smem:[#allocation2 + $0x2]]
    %s47 = sld [smem:[#allocation2 + $0x3]]
    %v48 = vmul.f32 %v37, %v43
    %v49 = vstv %s44
    %v50 = vmul.f32 %v49, %v48
    %v51 = vstv %s46
    %v52 = vadd.f32 %v50, %v51
    %53 = vst [vmem:[#allocation7] sm:$0xff] %v52
    %v54 = vmul.f32 %v39, %v43
    %v55 = vstv %s45
    %v56 = vmul.f32 %v55, %v54
    %v57 = vstv %s47
    %v58 = vadd.f32 %v56, %v57
    %s59 = scalar_lea.vmem [#allocation7], 8
    %60 = vst [vmem:[%s59] sm:$0xff] %v58
    // Predicated region
    $region18: #{tpu_custom_call.1} parent=1 // pred_check
      _
    $region19: #{tpu_custom_call.1} parent=1 // pred_check_branch
      %62 = sbr.rel (0) target = $region21
    $region20: #{tpu_custom_call.1} parent=1 // pred_region
      %s64 = ssub.s32 256, 256
      %65 = vsyncadd [#allocation4], %s64
      %s66 = sshll.u32 [#allocation7], 4
      %s67 = int_to_ptr.vmem [resolvable:$true] %s66
      %72 = dma.vmem_to_hbm [thread:$0]  %s67, 256, %s2, [#allocation4], 128, 128, 8
    $region21: #{tpu_custom_call.1} parent=1 // pred_fallthru
      _
    // Predicated region
    $region22: #{tpu_custom_call.1} parent=1 // pred_check
      _
    $region23: #{tpu_custom_call.1} parent=1 // pred_check_branch
      %74 = sbr.rel (0) target = $region25
    $region24: #{tpu_custom_call.1} parent=1 // pred_region
      %75 = dma.done [#allocation4], 256
    $region25: #{tpu_custom_call.1} parent=1 // pred_fallthru
      _
    %76 = vsyncpa [#allocation3], 1
    %77 = vsyncpa [#allocation4], 1
    %78 = vsyncpa [#allocation5], 1

</llo_original>
